<compile_context>
chip_gen: v6e
topology: v6e:2x2x1
jax: 0.10.0
libtpu: 0.0.40
codegen_flags: <defaults>
</compile_context>

<pallas_src>
import functools

import jax
import jax.numpy as jnp
from jax import lax
from jax.experimental import pallas as pl
from jax.experimental.pallas import tpu as pltpu

KH = KW = 3     # kernel_size = 3 (module default)
PAD = 1         # padding = 1     (module default)
_CHUNK = 8      # images folded into each MXU dot / epilogue pass


def _conv3x3_tanh_kernel(x_ref, w_ref, b_ref, o_ref, col_ref, *, H, W):
    # x_ref  : (nb, Cin, HW)        f32 input block (NCHW, spatial flattened)
    # w_ref  : (Cout, 9*Cin)        bf16 weights, tap-major / Cin-minor
    # b_ref  : (Cout, 1)            f32 bias
    # o_ref  : (nb, Cout, HW)       f32 output block
    # col_ref: (9*Cin, chunk*HW)    bf16 im2col operand (VMEM scratch)
    nb, cin, hw = x_ref.shape
    chunk = col_ref.shape[1] // hw

    # Lane-index helpers, computed once and reused by every tap of every image.
    lane = lax.broadcasted_iota(jnp.int32, (1, hw), 1)
    if (W & (W - 1)) == 0:
        xx = lane & (W - 1)                     # lane % W (W is a power of 2)
    else:
        xx = lax.rem(lane, W)

    # Per-tap validity masks reproducing Conv2d's zero padding: for output
    # pixel p = y*W + x and tap (kh, kw) the contribution is input pixel
    # p + dy*W + dx (dy = kh-1, dx = kw-1), zeroed when (y+dy, x+dx) is off
    # the image.  Hoisted + pre-broadcast so the tap loop does no re-broadcast.
    tap_masks = []
    for kh in range(KH):
        for kw in range(KW):
            dy, dx = kh - PAD, kw - PAD
            mask = None
            if dy < 0:
                mask = lane >= (-dy) * W
            elif dy > 0:
                mask = lane < (H - dy) * W
            if dx < 0:
                mx = xx >= -dx
                mask = mx if mask is None else (mask & mx)
            elif dx > 0:
                mx = xx < W - dx
                mask = mx if mask is None else (mask & mx)
            tap_masks.append(None if mask is None
                             else jnp.broadcast_to(mask, (cin, hw)))

    w = w_ref[...]                              # (Cout, 9*Cin) bf16
    b = b_ref[...]                              # (Cout, 1)     f32

    # Process `chunk` images per pass: build their im2col columns side by side
    # along the lane axis, run ONE MXU dot over all of them, then a full-width
    # f32 bias+tanh epilogue and per-image lane-aligned output stores.
    for c0 in range(0, nb, chunk):
        cn = min(chunk, nb - c0)
        for j in range(cn):
            xi = x_ref[c0 + j]                  # (Cin, HW): whole padded tile,
                                                # no relayout, no reshapes
            for kh in range(KH):
                for kw in range(KW):
                    tap = kh * KW + kw
                    dy, dx = kh - PAD, kw - PAD
                    shift_src = dy * W + dx
                    if shift_src == 0:
                        slab = xi
                    else:
                        # shifted[p] = xi[p + shift_src]; wrap-around pixels
                        # are exactly the ones zeroed by the boundary mask.
                        slab = pltpu.roll(xi, (-shift_src) % hw, 1)
                    mask = tap_masks[tap]
                    if mask is not None:
                        slab = jnp.where(mask, slab, 0.0)
                    # TODO(synk): on v6e/v7x the roll/select could run in bf16
                    # (halves VPU/XLU traffic); kept f32 for v5e compatibility.
                    col_ref[tap * cin:(tap + 1) * cin,
                            j * hw:(j + 1) * hw] = slab.astype(col_ref.dtype)

        acc = jnp.dot(w, col_ref[:, 0:cn * hw],           # (Cout, cn*HW) f32
                      preferred_element_type=jnp.float32)
        y = jnp.tanh(acc + b)                              # f32 epilogue
        for j in range(cn):
            o_ref[c0 + j] = y[:, j * hw:(j + 1) * hw].astype(o_ref.dtype)


def _default_block_n(n, cap=64):
    """Largest divisor of n that is <= cap while keeping a grid of >= 2 steps
    (so v7x's two TensorCores both get batch work); falls back to 1."""
    if n == 1:
        return 1
    best = 1
    for d in range(1, min(n, cap) + 1):
        if n % d == 0 and n // d >= 2:
            best = d
    return best


def head_tanh2d(x_nchw, w_oihw, bias, *, block_n=None):
    """Pallas implementation of HeadTanh2d.forward (tanh(Conv2d 3x3, pad=1))."""
    N, Cin, H, W = x_nchw.shape
    Cout, Cin_w, kh_, kw_ = w_oihw.shape
    assert (Cin_w, kh_, kw_) == (Cin, KH, KW), "only 3x3 conv, groups=1"
    # TODO(synk): only the module defaults (kernel_size=3, padding=1, stride=1,
    # dilation=1, groups=1) are implemented.
    HW = H * W

    if block_n is None:
        block_n = _default_block_n(N)
    assert N % block_n == 0
    chunk = min(block_n, _CHUNK)

    x = x_nchw.reshape(N, Cin, HW)                        # free reshape (NCHW)
    # OIHW -> (Cout, KH*KW*Cin), tap-major / Cin-minor; bf16 for the MXU.
    w2 = jnp.transpose(w_oihw, (0, 2, 3, 1)).reshape(Cout, KH * KW * Cin)
    w2 = w2.astype(jnp.bfloat16)
    b2 = bias.reshape(Cout, 1).astype(jnp.float32)

    kernel = functools.partial(_conv3x3_tanh_kernel, H=H, W=W)
    cost = pl.CostEstimate(
        flops=2 * N * Cout * KH * KW * Cin * HW,
        transcendentals=N * Cout * HW,
        bytes_accessed=N * HW * 4 * (Cin + Cout) + 2 * Cout * KH * KW * Cin + 4 * Cout)

    out = pl.pallas_call(
        kernel,
        out_shape=jax.ShapeDtypeStruct((N, Cout, HW), x_nchw.dtype),
        grid_spec=pltpu.PrefetchScalarGridSpec(
            num_scalar_prefetch=0,
            grid=(N // block_n,),
            in_specs=[
                pl.BlockSpec((block_n, Cin, HW), lambda n: (n, 0, 0)),
                pl.BlockSpec((Cout, KH * KW * Cin), lambda n: (0, 0)),
                pl.BlockSpec((Cout, 1), lambda n: (0, 0)),
            ],
            out_specs=pl.BlockSpec((block_n, Cout, HW), lambda n: (n, 0, 0)),
            scratch_shapes=[
                pltpu.VMEM((KH * KW * Cin, chunk * HW), jnp.bfloat16)],
        ),
        compiler_params=pltpu.CompilerParams(
            dimension_semantics=("parallel",)),
        cost_estimate=cost,
    )(x, w2, b2)

    return out.reshape(N, Cout, H, W)                     # free reshape (NCHW)


if __name__ == "__main__":
    key = jax.random.PRNGKey(0)
    kx, kw_, kb, kx2, kx3 = jax.random.split(key, 5)

    N, Cin, Cout, H, W = 2, 4, 4, 16, 16
    fan_in = Cin * KH * KW
    bound = float(1.0 / (fan_in ** 0.5))

    x = jax.random.normal(kx, (N, Cin, H, W), dtype=jnp.float32)
    w_oihw = jax.random.uniform(kw_, (Cout, Cin, KH, KW), jnp.float32,
                                minval=-bound, maxval=bound)
    bias = jax.random.uniform(kb, (Cout,), jnp.float32,
                              minval=-bound, maxval=bound)

    def reference(xv):
        # Same bf16 operand quantization as the kernel's MXU inputs; f32 accum.
        xq = xv.astype(jnp.bfloat16).astype(jnp.float32)
        wq = w_oihw.astype(jnp.bfloat16).astype(jnp.float32)
        conv = lax.conv_general_dilated(
            xq, wq, window_strides=(1, 1), padding=((PAD, PAD), (PAD, PAD)),
            dimension_numbers=("NCHW", "OIHW", "NCHW"),
            precision=lax.Precision.HIGHEST)
        return jnp.tanh(conv + bias[None, :, None, None])

    # Default block_n (N=2 -> block_n=1, grid=2: exercises the megacore path).
    out = jax.block_until_ready(head_tanh2d(x, w_oihw, bias))
    assert out.shape == (N, Cout, H, W)
    assert jnp.allclose(out, reference(x), atol=2e-3, rtol=2e-3), \
        "mismatch vs reference (default block_n)"

    # Multiple images per grid step (block_n=2, grid=2).
    x4 = jax.random.normal(kx2, (4, Cin, H, W), dtype=jnp.float32)
    out4 = jax.block_until_ready(head_tanh2d(x4, w_oihw, bias, block_n=2))
    assert jnp.allclose(out4, reference(x4), atol=2e-3, rtol=2e-3), \
        "mismatch vs reference (block_n=2)"

    # Multi-chunk path with a ragged last chunk (block_n=12 -> chunks 8 + 4).
    x12 = jax.random.normal(kx3, (12, Cin, H, W), dtype=jnp.float32)
    out12 = jax.block_until_ready(head_tanh2d(x12, w_oihw, bias, block_n=12))
    assert jnp.allclose(out12, reference(x12), atol=2e-3, rtol=2e-3), \
        "mismatch vs reference (block_n=12, multi-chunk)"

    print("KERNEL_OK")
</pallas_src>

<mosaic_0001>
module attributes {stable_mosaic.version = 11 : i64} {
  func.func @_conv3x3_tanh_kernel(%arg0: i32, %arg1: memref<1x4x256xf32, #tpu.memory_space<vmem>>, %arg2: memref<4x36xbf16, #tpu.memory_space<vmem>>, %arg3: memref<4x1xf32, #tpu.memory_space<vmem>>, %arg4: memref<1x4x256xf32, #tpu.memory_space<vmem>>, %arg5: memref<36x256xbf16, #tpu.memory_space<vmem>>) attributes {dimension_semantics = [#tpu.dimension_semantics<parallel>], iteration_bounds = array<i64: 2>, scalar_prefetch = 0 : i64, scratch_operands = 1 : i64, tpu.core_type = #tpu.core_type<tc>, window_params = [{transform_indices = @transform_0, window_bounds = array<i64: 1, 4, 256>}, {pipeline_mode = #tpu.pipeline_mode<synchronous>, transform_indices = @transform_1, window_bounds = array<i64: 4, 36>}, {pipeline_mode = #tpu.pipeline_mode<synchronous>, transform_indices = @transform_2, window_bounds = array<i64: 4, 1>}, {transform_indices = @transform_3, window_bounds = array<i64: 1, 4, 256>}]} {
    %0 = tpu.iota {dimensions = array<i32: 1>} : vector<1x256xi32>
    %c15_i32 = arith.constant 15 : i32
    %1 = vector.broadcast %c15_i32 : i32 to vector<1x256xi32>
    %2 = arith.andi %0, %1 : vector<1x256xi32>
    %c16_i32 = arith.constant 16 : i32
    %3 = vector.broadcast %c16_i32 : i32 to vector<1x256xi32>
    %4 = arith.cmpi sge, %0, %3 : vector<1x256xi32>
    %c1_i32 = arith.constant 1 : i32
    %5 = vector.broadcast %c1_i32 : i32 to vector<1x256xi32>
    %6 = arith.cmpi sge, %2, %5 : vector<1x256xi32>
    %7 = arith.andi %4, %6 : vector<1x256xi1>
    %8 = vector.shape_cast %7 : vector<1x256xi1> to vector<1x256xi1>
    %9 = vector.broadcast %8 : vector<1x256xi1> to vector<4x256xi1>
    %c16_i32_0 = arith.constant 16 : i32
    %10 = vector.broadcast %c16_i32_0 : i32 to vector<1x256xi32>
    %11 = arith.cmpi sge, %0, %10 : vector<1x256xi32>
    %12 = vector.shape_cast %11 : vector<1x256xi1> to vector<1x256xi1>
    %13 = vector.broadcast %12 : vector<1x256xi1> to vector<4x256xi1>
    %c16_i32_1 = arith.constant 16 : i32
    %14 = vector.broadcast %c16_i32_1 : i32 to vector<1x256xi32>
    %15 = arith.cmpi sge, %0, %14 : vector<1x256xi32>
    %c15_i32_2 = arith.constant 15 : i32
    %16 = vector.broadcast %c15_i32_2 : i32 to vector<1x256xi32>
    %17 = arith.cmpi slt, %2, %16 : vector<1x256xi32>
    %18 = arith.andi %15, %17 : vector<1x256xi1>
    %19 = vector.shape_cast %18 : vector<1x256xi1> to vector<1x256xi1>
    %20 = vector.broadcast %19 : vector<1x256xi1> to vector<4x256xi1>
    %c1_i32_3 = arith.constant 1 : i32
    %21 = vector.broadcast %c1_i32_3 : i32 to vector<1x256xi32>
    %22 = arith.cmpi sge, %2, %21 : vector<1x256xi32>
    %23 = vector.shape_cast %22 : vector<1x256xi1> to vector<1x256xi1>
    %24 = vector.broadcast %23 : vector<1x256xi1> to vector<4x256xi1>
    %c15_i32_4 = arith.constant 15 : i32
    %25 = vector.broadcast %c15_i32_4 : i32 to vector<1x256xi32>
    %26 = arith.cmpi slt, %2, %25 : vector<1x256xi32>
    %27 = vector.shape_cast %26 : vector<1x256xi1> to vector<1x256xi1>
    %28 = vector.broadcast %27 : vector<1x256xi1> to vector<4x256xi1>
    %c240_i32 = arith.constant 240 : i32
    %29 = vector.broadcast %c240_i32 : i32 to vector<1x256xi32>
    %30 = arith.cmpi slt, %0, %29 : vector<1x256xi32>
    %c1_i32_5 = arith.constant 1 : i32
    %31 = vector.broadcast %c1_i32_5 : i32 to vector<1x256xi32>
    %32 = arith.cmpi sge, %2, %31 : vector<1x256xi32>
    %33 = arith.andi %30, %32 : vector<1x256xi1>
    %34 = vector.shape_cast %33 : vector<1x256xi1> to vector<1x256xi1>
    %35 = vector.broadcast %34 : vector<1x256xi1> to vector<4x256xi1>
    %c240_i32_6 = arith.constant 240 : i32
    %36 = vector.broadcast %c240_i32_6 : i32 to vector<1x256xi32>
    %37 = arith.cmpi slt, %0, %36 : vector<1x256xi32>
    %38 = vector.shape_cast %37 : vector<1x256xi1> to vector<1x256xi1>
    %39 = vector.broadcast %38 : vector<1x256xi1> to vector<4x256xi1>
    %c240_i32_7 = arith.constant 240 : i32
    %40 = vector.broadcast %c240_i32_7 : i32 to vector<1x256xi32>
    %41 = arith.cmpi slt, %0, %40 : vector<1x256xi32>
    %c15_i32_8 = arith.constant 15 : i32
    %42 = vector.broadcast %c15_i32_8 : i32 to vector<1x256xi32>
    %43 = arith.cmpi slt, %2, %42 : vector<1x256xi32>
    %44 = arith.andi %41, %43 : vector<1x256xi1>
    %45 = vector.shape_cast %44 : vector<1x256xi1> to vector<1x256xi1>
    %46 = vector.broadcast %45 : vector<1x256xi1> to vector<4x256xi1>
    %c0 = arith.constant 0 : index
    %c0_9 = arith.constant 0 : index
    %47 = vector.load %arg2[%c0, %c0_9] : memref<4x36xbf16, #tpu.memory_space<vmem>>, vector<4x36xbf16>
    %c0_10 = arith.constant 0 : index
    %c0_11 = arith.constant 0 : index
    %48 = vector.load %arg3[%c0_10, %c0_11] : memref<4x1xf32, #tpu.memory_space<vmem>>, vector<4x1xf32>
    %c0_12 = arith.constant 0 : index
    %c0_13 = arith.constant 0 : index
    %c0_14 = arith.constant 0 : index
    %49 = vector.load %arg1[%c0_12, %c0_13, %c0_14] : memref<1x4x256xf32, #tpu.memory_space<vmem>>, vector<1x4x256xf32>
    %50 = vector.shape_cast %49 : vector<1x4x256xf32> to vector<4x256xf32>
    %c17_i32 = arith.constant 17 : i32
    %51 = tpu.dynamic_rotate %50 by %c17_i32 dim 1 : vector<4x256xf32>, i32 -> vector<4x256xf32>
    %cst = arith.constant 0.000000e+00 : f32
    %52 = vector.broadcast %cst : f32 to vector<4x256xf32>
    %53 = arith.select %9, %51, %52 : vector<4x256xi1>, vector<4x256xf32>
    %54 = arith.truncf %53 : vector<4x256xf32> to vector<4x256xbf16>
    %c0_15 = arith.constant 0 : index
    %c0_16 = arith.constant 0 : index
    %55 = vector.load %arg5[%c0_15, %c0_16] : memref<36x256xbf16, #tpu.memory_space<vmem>>, vector<4x256xbf16>
    tpu.vector_store %arg5[%c0_15, %c0_16], %54 {strides = array<i32>} : memref<36x256xbf16, #tpu.memory_space<vmem>>, vector<4x256xbf16>,
    %c16_i32_17 = arith.constant 16 : i32
    %56 = tpu.dynamic_rotate %50 by %c16_i32_17 dim 1 : vector<4x256xf32>, i32 -> vector<4x256xf32>
    %cst_18 = arith.constant 0.000000e+00 : f32
    %57 = vector.broadcast %cst_18 : f32 to vector<4x256xf32>
    %58 = arith.select %13, %56, %57 : vector<4x256xi1>, vector<4x256xf32>
    %59 = arith.truncf %58 : vector<4x256xf32> to vector<4x256xbf16>
    %c4 = arith.constant 4 : index
    %c0_19 = arith.constant 0 : index
    %60 = vector.load %arg5[%c4, %c0_19] : memref<36x256xbf16, #tpu.memory_space<vmem>>, vector<4x256xbf16>
    tpu.vector_store %arg5[%c4, %c0_19], %59 {strides = array<i32>} : memref<36x256xbf16, #tpu.memory_space<vmem>>, vector<4x256xbf16>,
    %c15_i32_20 = arith.constant 15 : i32
    %61 = tpu.dynamic_rotate %50 by %c15_i32_20 dim 1 : vector<4x256xf32>, i32 -> vector<4x256xf32>
    %cst_21 = arith.constant 0.000000e+00 : f32
    %62 = vector.broadcast %cst_21 : f32 to vector<4x256xf32>
    %63 = arith.select %20, %61, %62 : vector<4x256xi1>, vector<4x256xf32>
    %64 = arith.truncf %63 : vector<4x256xf32> to vector<4x256xbf16>
    %c8 = arith.constant 8 : index
    %c0_22 = arith.constant 0 : index
    %65 = vector.load %arg5[%c8, %c0_22] : memref<36x256xbf16, #tpu.memory_space<vmem>>, vector<4x256xbf16>
    tpu.vector_store %arg5[%c8, %c0_22], %64 {strides = array<i32>} : memref<36x256xbf16, #tpu.memory_space<vmem>>, vector<4x256xbf16>,
    %c1_i32_23 = arith.constant 1 : i32
    %66 = tpu.dynamic_rotate %50 by %c1_i32_23 dim 1 : vector<4x256xf32>, i32 -> vector<4x256xf32>
    %cst_24 = arith.constant 0.000000e+00 : f32
    %67 = vector.broadcast %cst_24 : f32 to vector<4x256xf32>
    %68 = arith.select %24, %66, %67 : vector<4x256xi1>, vector<4x256xf32>
    %69 = arith.truncf %68 : vector<4x256xf32> to vector<4x256xbf16>
    %c12 = arith.constant 12 : index
    %c0_25 = arith.constant 0 : index
    %70 = vector.load %arg5[%c12, %c0_25] : memref<36x256xbf16, #tpu.memory_space<vmem>>, vector<4x256xbf16>
    tpu.vector_store %arg5[%c12, %c0_25], %69 {strides = array<i32>} : memref<36x256xbf16, #tpu.memory_space<vmem>>, vector<4x256xbf16>,
    %71 = arith.truncf %50 : vector<4x256xf32> to vector<4x256xbf16>
    %c16 = arith.constant 16 : index
    %c0_26 = arith.constant 0 : index
    %72 = vector.load %arg5[%c16, %c0_26] : memref<36x256xbf16, #tpu.memory_space<vmem>>, vector<4x256xbf16>
    tpu.vector_store %arg5[%c16, %c0_26], %71 {strides = array<i32>} : memref<36x256xbf16, #tpu.memory_space<vmem>>, vector<4x256xbf16>,
    %c255_i32 = arith.constant 255 : i32
    %73 = tpu.dynamic_rotate %50 by %c255_i32 dim 1 : vector<4x256xf32>, i32 -> vector<4x256xf32>
    %cst_27 = arith.constant 0.000000e+00 : f32
    %74 = vector.broadcast %cst_27 : f32 to vector<4x256xf32>
    %75 = arith.select %28, %73, %74 : vector<4x256xi1>, vector<4x256xf32>
    %76 = arith.truncf %75 : vector<4x256xf32> to vector<4x256xbf16>
    %c20 = arith.constant 20 : index
    %c0_28 = arith.constant 0 : index
    %77 = vector.load %arg5[%c20, %c0_28] : memref<36x256xbf16, #tpu.memory_space<vmem>>, vector<4x256xbf16>
    tpu.vector_store %arg5[%c20, %c0_28], %76 {strides = array<i32>} : memref<36x256xbf16, #tpu.memory_space<vmem>>, vector<4x256xbf16>,
    %c241_i32 = arith.constant 241 : i32
    %78 = tpu.dynamic_rotate %50 by %c241_i32 dim 1 : vector<4x256xf32>, i32 -> vector<4x256xf32>
    %cst_29 = arith.constant 0.000000e+00 : f32
    %79 = vector.broadcast %cst_29 : f32 to vector<4x256xf32>
    %80 = arith.select %35, %78, %79 : vector<4x256xi1>, vector<4x256xf32>
    %81 = arith.truncf %80 : vector<4x256xf32> to vector<4x256xbf16>
    %c24 = arith.constant 24 : index
    %c0_30 = arith.constant 0 : index
    %82 = vector.load %arg5[%c24, %c0_30] : memref<36x256xbf16, #tpu.memory_space<vmem>>, vector<4x256xbf16>
    tpu.vector_store %arg5[%c24, %c0_30], %81 {strides = array<i32>} : memref<36x256xbf16, #tpu.memory_space<vmem>>, vector<4x256xbf16>,
    %c240_i32_31 = arith.constant 240 : i32
    %83 = tpu.dynamic_rotate %50 by %c240_i32_31 dim 1 : vector<4x256xf32>, i32 -> vector<4x256xf32>
    %cst_32 = arith.constant 0.000000e+00 : f32
    %84 = vector.broadcast %cst_32 : f32 to vector<4x256xf32>
    %85 = arith.select %39, %83, %84 : vector<4x256xi1>, vector<4x256xf32>
    %86 = arith.truncf %85 : vector<4x256xf32> to vector<4x256xbf16>
    %c28 = arith.constant 28 : index
    %c0_33 = arith.constant 0 : index
    %87 = vector.load %arg5[%c28, %c0_33] : memref<36x256xbf16, #tpu.memory_space<vmem>>, vector<4x256xbf16>
    tpu.vector_store %arg5[%c28, %c0_33], %86 {strides = array<i32>} : memref<36x256xbf16, #tpu.memory_space<vmem>>, vector<4x256xbf16>,
    %c239_i32 = arith.constant 239 : i32
    %88 = tpu.dynamic_rotate %50 by %c239_i32 dim 1 : vector<4x256xf32>, i32 -> vector<4x256xf32>
    %cst_34 = arith.constant 0.000000e+00 : f32
    %89 = vector.broadcast %cst_34 : f32 to vector<4x256xf32>
    %90 = arith.select %46, %88, %89 : vector<4x256xi1>, vector<4x256xf32>
    %91 = arith.truncf %90 : vector<4x256xf32> to vector<4x256xbf16>
    %c32 = arith.constant 32 : index
    %c0_35 = arith.constant 0 : index
    %92 = vector.load %arg5[%c32, %c0_35] : memref<36x256xbf16, #tpu.memory_space<vmem>>, vector<4x256xbf16>
    tpu.vector_store %arg5[%c32, %c0_35], %91 {strides = array<i32>} : memref<36x256xbf16, #tpu.memory_space<vmem>>, vector<4x256xbf16>,
    %c0_36 = arith.constant 0 : index
    %c0_37 = arith.constant 0 : index
    %93 = vector.load %arg5[%c0_36, %c0_37] : memref<36x256xbf16, #tpu.memory_space<vmem>>, vector<36x256xbf16>
    %cst_38 = arith.constant dense<0.000000e+00> : vector<4x256xf32>
    %94 = tpu.matmul %47, %93, %cst_38 {dimension_numbers = #tpu.dot_dimension_numbers<[1], [0], [0], [1], [0, 0, 1, 1], [], []>} : vector<4x36xbf16>, vector<36x256xbf16>, vector<4x256xf32> -> vector<4x256xf32>
    %95 = vector.broadcast %48 : vector<4x1xf32> to vector<4x256xf32>
    %96 = arith.addf %94, %95 : vector<4x256xf32>
    %97 = math.tanh %96 : vector<4x256xf32>
    %c0_39 = arith.constant 0 : index
    %c0_40 = arith.constant 0 : index
    %c0_41 = arith.constant 0 : index
    %98 = vector.load %arg4[%c0_39, %c0_40, %c0_41] : memref<1x4x256xf32, #tpu.memory_space<vmem>>, vector<1x4x256xf32>
    %99 = vector.shape_cast %98 : vector<1x4x256xf32> to vector<4x256xf32>
    %100 = vector.shape_cast %97 : vector<4x256xf32> to vector<1x4x256xf32>
    tpu.vector_store %arg4[%c0_39, %c0_40, %c0_41], %100 {strides = array<i32>} : memref<1x4x256xf32, #tpu.memory_space<vmem>>, vector<1x4x256xf32>,
    return
  }
  func.func @transform_0(%arg0: i32) -> (i32, i32, i32) {
    %c0_i32 = arith.constant 0 : i32
    %c0_i32_0 = arith.constant 0 : i32
    %c0_i32_1 = arith.constant 0 : i32
    return %arg0, %c0_i32, %c0_i32_0 : i32, i32, i32
  }
  func.func @transform_1(%arg0: i32) -> (i32, i32) {
    %c0_i32 = arith.constant 0 : i32
    %c0_i32_0 = arith.constant 0 : i32
    %c0_i32_1 = arith.constant 0 : i32
    return %c0_i32, %c0_i32_0 : i32, i32
  }
  func.func @transform_2(%arg0: i32) -> (i32, i32) {
    %c0_i32 = arith.constant 0 : i32
    %c0_i32_0 = arith.constant 0 : i32
    %c0_i32_1 = arith.constant 0 : i32
    return %c0_i32, %c0_i32_0 : i32, i32
  }
  func.func @transform_3(%arg0: i32) -> (i32, i32, i32) {
    %c0_i32 = arith.constant 0 : i32
    %c0_i32_0 = arith.constant 0 : i32
    %c0_i32_1 = arith.constant 0 : i32
    return %arg0, %c0_i32, %c0_i32_0 : i32, i32, i32
  }
}

</mosaic_0001>

<llo_original>
// kernel: tpu_custom_call.1
$region0: #{tpu_custom_call.1}
  #allocation0 [shape = 'u32[]', space=smem, size = 0x4, offset = 0x4, fixed_abs, tag = 'smem constant byte address 0x4 - core index']
  #allocation1 [shape = 'u32[144,128]{1,0:T(1,128)}', space=vmem, size = 0x12000, scoped, tag = 'internal scratch']
  #allocation2 [shape = 'bf16[36,256]{1,0:T(8,128)(2,1)}', space=vmem, size = 0x5000, scoped, tag = 'scratch operand']
  %s0 = inlined_call_operand.hbm [shape: f32[2,4,256], index: 0, kind: input, shape index: {}]
  %s1 = inlined_call_operand.vmem [shape: bf16[4,36], index: 1, kind: input, shape index: {}]
  %s2 = inlined_call_operand.vmem [shape: f32[4,1], index: 2, kind: input, shape index: {}]
  %s3 = inlined_call_operand.hbm [shape: f32[2,4,256], index: 3, kind: output, shape index: {}]
  %s4 = sld [smem:[#allocation0]]
  $region49: #{tpu_custom_call.1} parent=0
    _
  %s6 = ssub.s32 1, %s4
  %s7 = scalar_select 0, %s6, %s4
  $region1: #{tpu_custom_call.1} parent=0
    #allocation3 [shape = 'u8[8192]{0}', space=vmem, size = 0x2000, scoped, tag = 'input window, operand 0']
    #allocation4 [shape = 's32[2]{0}', space=sflag, size = 0x8, scoped, tag = 'scoped memory for tpu_custom_call.1']
    #allocation5 [shape = 's32[2]{0}', space=sflag, size = 0x8, scoped, tag = 'scoped memory for tpu_custom_call.1']
    #allocation6 [shape = 'u8[8192]{0}', space=vmem, size = 0x2000, scoped, tag = 'output window, operand 0']
    %8 = vsyncpa [#allocation4], 0
    %s9 = scalar_lea.sflag [#allocation4], 1
    %10 = vsyncpa %s9, 0
    %11 = vsyncpa [#allocation5], 0
    %s12 = scalar_lea.sflag [#allocation5], 1
    %13 = vsyncpa %s12, 0
    loop: start=0, step=1, limit=4
    $region2: #{tpu_custom_call.1} parent=1 // loop_pre_header
      _
    $region3: #{tpu_custom_call.1} parent=1 // loop_header
      %s15 = sphi 0, %s19
      %p16 = scmp.ge.s32.totalorder %s15, 4
      %s25 = sphi 0, %s27
      %s28 = sphi 0, %s25
      %s29 = sphi 0, %s28
      %s45 = sphi 0, %s29
      %s49 = sphi 0, %s49
      %s51 = sphi 0, %s49
      %s52 = sphi 0, %s51
      %s66 = sphi 0, %s52
      %s70 = sphi 0, %s70
      %s72 = sphi 0, %s70
      %s73 = sphi 0, %s72
      %s87 = sphi 0, %s73
      %s93 = sphi 0, %s95
      %s96 = sphi 0, %s93
      %s97 = sphi 0, %s96
      %s113 = sphi 0, %s97
    $region4: #{tpu_custom_call.1} parent=1 // loop_header_branch
      %18 = sbr.rel (%p16) target = $region8
    $region5: #{tpu_custom_call.1} parent=1 // loop_body
      %s20 = ssub.s32 %s15, 1
      %s21 = ssub.s32 %s15, 2
      %s22 = sadd.s32 %s15, 1
      %s23 = ssub.s32 %s15, %s22
      %p24 = scmp.eq.s32.totalorder %s23, 0
      %s26 = sadd.s32 %s25, 1
      %s27 = scalar_select %p24, %s25, %s26
      %p30 = pneg %p24
      %p31 = scmp.eq.s32.totalorder %s15, 1
      %p32 = por %p30, %p31
      %p33 = scmp.ne.s32.totalorder %s25, %s28
      %p34 = scmp.eq.s32.totalorder %s15, 0
      %p35 = por %p33, %p34
      %p36 = scmp.ne.s32.totalorder %s25, %s28
      %p37 = scmp.eq.s32.totalorder %s20, 1
      %p38 = por %p36, %p37
      %p39 = scmp.ne.s32.totalorder %s28, %s29
      %p40 = scmp.eq.s32.totalorder %s20, 0
      %p41 = por %p39, %p40
      %p42 = scmp.ne.s32.totalorder %s28, %s29
      %p43 = scmp.eq.s32.totalorder %s21, 1
      %p44 = por %p42, %p43
      %p46 = scmp.ne.s32.totalorder %s29, %s45
      %p47 = scmp.eq.s32.totalorder %s21, 0
      %p48 = por %p46, %p47
      %s50 = sadd.s32 %s49, 1
      %p53 = scmp.eq.s32.totalorder %s15, 1
      %p54 = scmp.ne.s32.totalorder %s49, %s51
      %p55 = scmp.eq.s32.totalorder %s15, 0
      %p56 = por %p54, %p55
      %p57 = scmp.ne.s32.totalorder %s49, %s51
      %p58 = scmp.eq.s32.totalorder %s20, 1
      %p59 = por %p57, %p58
      %p60 = scmp.ne.s32.totalorder %s51, %s52
      %p61 = scmp.eq.s32.totalorder %s20, 0
      %p62 = por %p60, %p61
      %p63 = scmp.ne.s32.totalorder %s51, %s52
      %p64 = scmp.eq.s32.totalorder %s21, 1
      %p65 = por %p63, %p64
      %p67 = scmp.ne.s32.totalorder %s52, %s66
      %p68 = scmp.eq.s32.totalorder %s21, 0
      %p69 = por %p67, %p68
      %s71 = sadd.s32 %s70, 1
      %p74 = scmp.eq.s32.totalorder %s15, 1
      %p75 = scmp.ne.s32.totalorder %s70, %s72
      %p76 = scmp.eq.s32.totalorder %s15, 0
      %p77 = por %p75, %p76
      %p78 = scmp.ne.s32.totalorder %s70, %s72
      %p79 = scmp.eq.s32.totalorder %s20, 1
      %p80 = por %p78, %p79
      %p81 = scmp.ne.s32.totalorder %s72, %s73
      %p82 = scmp.eq.s32.totalorder %s20, 0
      %p83 = por %p81, %p82
      %p84 = scmp.ne.s32.totalorder %s72, %s73
      %p85 = scmp.eq.s32.totalorder %s21, 1
      %p86 = por %p84, %p85
      %p88 = scmp.ne.s32.totalorder %s73, %s87
      %p89 = scmp.eq.s32.totalorder %s21, 0
      %p90 = por %p88, %p89
      %s91 = ssub.s32 %s15, %s22
      %p92 = scmp.eq.s32.totalorder %s91, 0
      %s94 = sadd.s32 %s93, 1
      %s95 = scalar_select %p92, %s93, %s94
      %p98 = pneg %p92
      %p99 = scmp.eq.s32.totalorder %s15, 1
      %p100 = por %p98, %p99
      %p101 = scmp.ne.s32.totalorder %s93, %s96
      %p102 = scmp.eq.s32.totalorder %s15, 0
      %p103 = por %p101, %p102
      %p104 = scmp.ne.s32.totalorder %s93, %s96
      %p105 = scmp.eq.s32.totalorder %s20, 1
      %p106 = por %p104, %p105
      %p107 = scmp.ne.s32.totalorder %s96, %s97
      %p108 = scmp.eq.s32.totalorder %s20, 0
      %p109 = por %p107, %p108
      %p110 = scmp.ne.s32.totalorder %s96, %s97
      %p111 = scmp.eq.s32.totalorder %s21, 1
      %p112 = por %p110, %p111
      %p114 = scmp.ne.s32.totalorder %s97, %s113
      %p115 = scmp.eq.s32.totalorder %s21, 0
      %p116 = por %p114, %p115
      %p117 = scmp.le.s32.totalorder 1, %s15
      %p118 = scmp.lt.s32.totalorder %s15, 3
      %p119 = pnand %p117, %p118
      %p120 = pneg %p119
      // Predicated region
      $region9: #{tpu_custom_call.1} parent=5 // pred_check
        _
      $region10: #{tpu_custom_call.1} parent=5 // pred_check_branch
        %122 = sbr.rel (%p119) target = $region12
      $region11: #{tpu_custom_call.1} parent=5 // pred_region
        %s123 = ssub.s32 %s15, 1
        // Predicated region
        $region13: #{tpu_custom_call.1} parent=11 // pred_check
          %p124 = pneg %p62
        $region14: #{tpu_custom_call.1} parent=11 // pred_check_branch
          %126 = sbr.rel (%p124) target = $region16
        $region15: #{tpu_custom_call.1} parent=11 // pred_region
          _
        $region16: #{tpu_custom_call.1} parent=11 // pred_fallthru
          _
        // Predicated region
        $region17: #{tpu_custom_call.1} parent=11 // pred_check
          %p127 = pneg %p83
        $region18: #{tpu_custom_call.1} parent=11 // pred_check_branch
          %129 = sbr.rel (%p127) target = $region20
        $region19: #{tpu_custom_call.1} parent=11 // pred_region
          _
        $region20: #{tpu_custom_call.1} parent=11 // pred_fallthru
          _
      $region12: #{tpu_custom_call.1} parent=5 // pred_fallthru
        _
      %p130 = scmp.lt.s32.totalorder %s15, 2
      // Predicated region
      $region21: #{tpu_custom_call.1} parent=5 // pred_check
        %p131 = pneg %p130
      $region22: #{tpu_custom_call.1} parent=5 // pred_check_branch
        %133 = sbr.rel (%p131) target = $region24
      $region23: #{tpu_custom_call.1} parent=5 // pred_region
        // Predicated region
        $region25: #{tpu_custom_call.1} parent=23 // pred_check
          %p134 = pneg %p35
        $region26: #{tpu_custom_call.1} parent=23 // pred_check_branch
          %136 = sbr.rel (%p134) target = $region28
        $region27: #{tpu_custom_call.1} parent=23 // pred_region
          %s137 = sand.u32 %s25, 1
          %s138 = scalar_lea.sflag [#allocation4], %s137
          %s139 = sand.u32 %s25, 1
          %s140 = smul.addr %s139, 8
          %s141 = scalar_lea.vmem [#allocation3], %s140
          %s143 = ssub.s32 128, 128
          %144 = vsyncadd %s138, %s143
          %s145 = smul.addr %s15, 2
          %s146 = smul.addr %s145, 64
          %s147 = scalar_lea.hbm %s0, %s146
          %s149 = sshll.u32 %s141, 4
          %s150 = int_to_ptr.vmem [resolvable:$true] %s149
          %152 = dma.hbm_to_vmem [thread:$0]  %s147, 128, %s150, %s138
        $region28: #{tpu_custom_call.1} parent=23 // pred_fallthru
          _
      $region24: #{tpu_custom_call.1} parent=5 // pred_fallthru
        _
      %p153 = scmp.le.s32.totalorder 1, %s15
      %p154 = scmp.lt.s32.totalorder %s15, 3
      %p155 = pnand %p153, %p154
      %p156 = pneg %p155
      // Predicated region
      $region29: #{tpu_custom_call.1} parent=5 // pred_check
        _
      $region30: #{tpu_custom_call.1} parent=5 // pred_check_branch
        %158 = sbr.rel (%p155) target = $region32
      $region31: #{tpu_custom_call.1} parent=5 // pred_region
        %s159 = ssub.s32 %s15, 1
        %s160 = sand.u32 %s28, 1
        %s161 = scalar_lea.sflag [#allocation4], %s160
        %s162 = sand.u32 %s28, 1
        %s163 = smul.addr %s162, 8
        %s164 = scalar_lea.vmem [#allocation3], %s163
        // Predicated region
        $region33: #{tpu_custom_call.1} parent=31 // pred_check
          %p165 = pneg %p41
        $region34: #{tpu_custom_call.1} parent=31 // pred_check_branch
          %167 = sbr.rel (%p165) target = $region36
        $region35: #{tpu_custom_call.1} parent=31 // pred_region
          %168 = dma.done %s161, 128
        $region36: #{tpu_custom_call.1} parent=31 // pred_fallthru
          _
        %s169 = sand.u32 %s28, 1
        %s170 = scalar_lea.sflag [#allocation4], %s169
        %s171 = sand.u32 %s28, 1
        %s172 = smul.addr %s171, 8
        %s173 = scalar_lea.vmem [#allocation3], %s172
        %p174 = pneg %p41
        %p175 = pneg %p38
        %p176 = pneg %p62
        %p177 = pneg %p59
        %p178 = pneg %p83
        %p179 = pneg %p80
        %p180 = pneg %p109
        %p181 = pneg %p106
        %s182 = sand.u32 %s96, 1
        %s183 = scalar_lea.sflag [#allocation5], %s182
        %s184 = sand.u32 %s96, 1
        %s185 = smul.addr %s184, 8
        %s186 = scalar_lea.vmem [#allocation6], %s185
        %v188 = vlaneseq
        %v189 = vand.u32 %v188, 127
        %v190 = vadd.s32 %v189, 128
        %v191 = vand.u32 %v189, 15
        %v192 = vand.u32 %v190, 15
        %vm193 = vcmp.ge.s32.totalorder %v189, 16
        %vm194 = vcmp.ge.s32.totalorder %v190, 16
        %vm195 = vcmp.ge.s32.totalorder %v191, 1
        %vm196 = vcmp.ge.s32.totalorder %v192, 1
        %vm197 = vmand %vm193, %vm195
        %vm198 = vmand %vm194, %vm196
        %v199 = vsel %vm197, 1, 0
        %v200 = vsel %vm198, 1, 0
        %vm201 = vcmp.eq.s32.totalorder %v199, 1
        %vm202 = vcmp.eq.s32.totalorder %v200, 1
        %v203 = vsel %vm193, 1, 0
        %v204 = vsel %vm194, 1, 0
        %vm205 = vcmp.eq.s32.totalorder %v203, 1
        %vm206 = vcmp.eq.s32.totalorder %v204, 1
        %vm207 = vcmp.lt.s32.totalorder %v191, 15
        %vm208 = vcmp.lt.s32.totalorder %v192, 15
        %vm209 = vmand %vm193, %vm207
        %vm210 = vmand %vm194, %vm208
        %v211 = vsel %vm209, 1, 0
        %v212 = vsel %vm210, 1, 0
        %vm213 = vcmp.eq.s32.totalorder %v211, 1
        %vm214 = vcmp.eq.s32.totalorder %v212, 1
        %v215 = vsel %vm195, 1, 0
        %v216 = vsel %vm196, 1, 0
        %vm217 = vcmp.eq.s32.totalorder %v215, 1
        %vm218 = vcmp.eq.s32.totalorder %v216, 1
        %v219 = vsel %vm207, 1, 0
        %v220 = vsel %vm208, 1, 0
        %vm221 = vcmp.eq.s32.totalorder %v219, 1
        %vm222 = vcmp.eq.s32.totalorder %v220, 1
        %vm223 = vcmp.lt.s32.totalorder %v189, 240
        %vm224 = vcmp.lt.s32.totalorder %v190, 240
        %vm225 = vmand %vm223, %vm195
        %vm226 = vmand %vm224, %vm196
        %v227 = vsel %vm225, 1, 0
        %v228 = vsel %vm226, 1, 0
        %vm229 = vcmp.eq.s32.totalorder %v227, 1
        %vm230 = vcmp.eq.s32.totalorder %v228, 1
        %v231 = vsel %vm223, 1, 0
        %v232 = vsel %vm224, 1, 0
        %vm233 = vcmp.eq.s32.totalorder %v231, 1
        %vm234 = vcmp.eq.s32.totalorder %v232, 1
        %vm235 = vmand %vm223, %vm207
        %vm236 = vmand %vm224, %vm208
        %v237 = vsel %vm235, 1, 0
        %v238 = vsel %vm236, 1, 0
        %vm239 = vcmp.eq.s32.totalorder %v237, 1
        %vm240 = vcmp.eq.s32.totalorder %v238, 1
        %v241 = vld [vmem:[%s1] sm:$0x3]
        %v242 = vld [vmem:[%s2] sm:$0xf]
        %v243 = vld [vmem:[%s164] sm:$0xff]
        %v245 = vcombine.high %v243, %v243
        %247 = vrot.lane.b32.xlu0 %v243, 17
        %v248 = vpop.permute.xlu0 %247
        %249 = vrot.lane.b32.xlu0 %v245, 17
        %v250 = vpop.permute.xlu0 %249
        %vm251 = vcmp.lt.s32.totalorder %v189, 17
        %v252 = vsel %vm251, %v248, %v250
        %v253 = vsel %vm251, %v250, %v248
        %v254 = vsel %vm201, %v253, 0.0
        %v255 = vsel %vm202, %v252, 0.0
        %v256 = vpack.c.bf16 %v254, %v254
        %v257 = vpack.c.bf16 %v255, %v255
        %v260 = vunpack.c.l.b16 %v256
        %v261 = vunpack.c.l.b16 %v257
        %v262 = vpack.c.b16 %v261, %v260
        %264 = vst [vmem:[#allocation2] sm:$0x33] %v262
        %265 = vrot.lane.b32.xlu0 %v243, 16
        %v266 = vpop.permute.xlu0 %265
        %267 = vrot.lane.b32.xlu0 %v245, 16
        %v268 = vpop.permute.xlu0 %267
        %vm269 = vcmp.lt.s32.totalorder %v189, 16
        %v270 = vsel %vm269, %v266, %v268
        %v271 = vsel %vm269, %v268, %v266
        %v272 = vsel %vm205, %v271, 0.0
        %v273 = vsel %vm206, %v270, 0.0
        %v274 = vpack.c.bf16 %v272, %v272
        %v275 = vpack.c.bf16 %v273, %v273
        %v278 = vunpack.c.l.b16 %v274
        %v279 = vunpack.c.l.b16 %v275
        %v280 = vpack.c.b16 %v279, %v278
        %v281 = vrot.slane %v280, 6
        %283 = vst [vmem:[#allocation2] sm:$0xcc] %v281
        %284 = vrot.lane.b32.xlu0 %v243, 15
        %v285 = vpop.permute.xlu0 %284
        %286 = vrot.lane.b32.xlu0 %v245, 15
        %v287 = vpop.permute.xlu0 %286
        %vm288 = vcmp.lt.s32.totalorder %v189, 15
        %v289 = vsel %vm288, %v285, %v287
        %v290 = vsel %vm288, %v287, %v285
        %v291 = vsel %vm213, %v290, 0.0
        %v292 = vsel %vm214, %v289, 0.0
        %v293 = vpack.c.bf16 %v291, %v291
        %v294 = vpack.c.bf16 %v292, %v292
        %v297 = vunpack.c.l.b16 %v293
        %v298 = vunpack.c.l.b16 %v294
        %v299 = vpack.c.b16 %v298, %v297
        %301 = vst [vmem:[#allocation2 + $0x8] sm:$0x33] %v299
        %302 = vrot.lane.b32.xlu0 %v243, 1
        %v303 = vpop.permute.xlu0 %302
        %304 = vrot.lane.b32.xlu0 %v245, 1
        %v305 = vpop.permute.xlu0 %304
        %vm306 = vcmp.lt.s32.totalorder %v189, 1
        %v307 = vsel %vm306, %v303, %v305
        %v308 = vsel %vm306, %v305, %v303
        %v309 = vsel %vm217, %v308, 0.0
        %v310 = vsel %vm218, %v307, 0.0
        %v311 = vpack.c.bf16 %v309, %v309
        %v312 = vpack.c.bf16 %v310, %v310
        %v315 = vunpack.c.l.b16 %v311
        %v316 = vunpack.c.l.b16 %v312
        %v317 = vpack.c.b16 %v316, %v315
        %v318 = vrot.slane %v317, 6
        %320 = vst [vmem:[#allocation2 + $0x8] sm:$0xcc] %v318
        %v321 = vpack.c.bf16 %v243, %v243
        %v322 = vpack.c.bf16 %v245, %v245
        %v325 = vunpack.c.l.b16 %v321
        %v326 = vunpack.c.l.b16 %v322
        %v327 = vpack.c.b16 %v326, %v325
        %329 = vst [vmem:[#allocation2 + $0x10] sm:$0x33] %v327
        %330 = vrot.lane.b32.xlu0 %v243, 127
        %v331 = vpop.permute.xlu0 %330
        %332 = vrot.lane.b32.xlu0 %v245, 127
        %v333 = vpop.permute.xlu0 %332
        %vm334 = vcmp.lt.s32.totalorder %v189, 127
        %v335 = vsel %vm334, %v331, %v333
        %v336 = vsel %vm334, %v333, %v331
        %v337 = vsel %vm221, %v335, 0.0
        %v338 = vsel %vm222, %v336, 0.0
        %v339 = vpack.c.bf16 %v337, %v337
        %v340 = vpack.c.bf16 %v338, %v338
        %v343 = vunpack.c.l.b16 %v339
        %v344 = vunpack.c.l.b16 %v340
        %v345 = vpack.c.b16 %v344, %v343
        %v346 = vrot.slane %v345, 6
        %348 = vst [vmem:[#allocation2 + $0x10] sm:$0xcc] %v346
        %349 = vrot.lane.b32.xlu0 %v243, 113
        %v350 = vpop.permute.xlu0 %349
        %351 = vrot.lane.b32.xlu0 %v245, 113
        %v352 = vpop.permute.xlu0 %351
        %vm353 = vcmp.lt.s32.totalorder %v189, 113
        %v354 = vsel %vm353, %v350, %v352
        %v355 = vsel %vm353, %v352, %v350
        %v356 = vsel %vm229, %v354, 0.0
        %v357 = vsel %vm230, %v355, 0.0
        %v358 = vpack.c.bf16 %v356, %v356
        %v359 = vpack.c.bf16 %v357, %v357
        %v362 = vunpack.c.l.b16 %v358
        %v363 = vunpack.c.l.b16 %v359
        %v364 = vpack.c.b16 %v363, %v362
        %366 = vst [vmem:[#allocation2 + $0x18] sm:$0x33] %v364
        %367 = vrot.lane.b32.xlu0 %v243, 112
        %v368 = vpop.permute.xlu0 %367
        %369 = vrot.lane.b32.xlu0 %v245, 112
        %v370 = vpop.permute.xlu0 %369
        %vm371 = vcmp.lt.s32.totalorder %v189, 112
        %v372 = vsel %vm371, %v368, %v370
        %v373 = vsel %vm371, %v370, %v368
        %v374 = vsel %vm233, %v372, 0.0
        %v375 = vsel %vm234, %v373, 0.0
        %v376 = vpack.c.bf16 %v374, %v374
        %v377 = vpack.c.bf16 %v375, %v375
        %v380 = vunpack.c.l.b16 %v376
        %v381 = vunpack.c.l.b16 %v377
        %v382 = vpack.c.b16 %v381, %v380
        %v383 = vrot.slane %v382, 6
        %385 = vst [vmem:[#allocation2 + $0x18] sm:$0xcc] %v383
        %386 = vrot.lane.b32.xlu0 %v243, 111
        %v387 = vpop.permute.xlu0 %386
        %388 = vrot.lane.b32.xlu0 %v245, 111
        %v389 = vpop.permute.xlu0 %388
        %vm390 = vcmp.lt.s32.totalorder %v189, 111
        %v391 = vsel %vm390, %v387, %v389
        %v392 = vsel %vm390, %v389, %v387
        %v393 = vsel %vm239, %v391, 0.0
        %v394 = vsel %vm240, %v392, 0.0
        %v395 = vpack.c.bf16 %v393, %v393
        %v396 = vpack.c.bf16 %v394, %v394
        %v399 = vunpack.c.l.b16 %v395
        %v400 = vunpack.c.l.b16 %v396
        %v401 = vpack.c.b16 %v400, %v399
        %403 = vst [vmem:[#allocation2 + $0x20] sm:$0x33] %v401
        %v404 = vld [vmem:[#allocation2] sm:$0xff]
        %v405 = vld [vmem:[#allocation2 + $0x8] sm:$0xff]
        %v406 = vld [vmem:[#allocation2 + $0x10] sm:$0xff]
        %v407 = vld [vmem:[#allocation2 + $0x18] sm:$0xff]
        %v408 = vld [vmem:[#allocation2 + $0x20] sm:$0x33]
        %410 = vset.pattern.permute.xlu0 0
        %411 = vperm.xlu0 %410, %v242
        %v412 = vpop.permute.xlu0 %411
        %v419 = vunpack.c.l.b16 %v404
        %v420 = vunpack.c.h.b16 %v404
        %v421 = vunpack.c.l.b16 %v405
        %v422 = vunpack.c.h.b16 %v405
        %v423 = vunpack.c.l.b16 %v406
        %v424 = vunpack.c.h.b16 %v406
        %v425 = vunpack.c.l.b16 %v407
        %v426 = vunpack.c.h.b16 %v407
        %v427 = vunpack.c.l.b16 %v408
        %v428 = vunpack.c.h.b16 %v408
        %v429 = vpack.c.b16 %v421, %v419
        %v430 = vpack.c.b16 %v422, %v420
        %v431 = vpack.c.b16 %v425, %v423
        %v432 = vpack.c.b16 %v426, %v424
        %v433 = vpack.c.b16 %v427, %v427
        %v434 = vpack.c.b16 %v428, %v428
        %vm439 = vcmask 293888
        %v441 = vsel %vm439, %v241, 0
        %vm443 = vcmask 1041408
        %v445 = vsel %vm443, %v433, 0
        %v448 = vsel %vm443, %v434, 0
        %450 = vmatprep.subr.bf16.mxu0 0
        %451 = vmatpush1.bf16.msra.mxu0 0
        %452 = vmatprep.subr.bf16.mxu0 0
        %453 = vmatpush1.bf16.msra.mxu0 0
        %454 = vmatprep.subr.bf16.mxu0 0
        %455 = vmatpush1.bf16.msra.mxu0 0
        %456 = vmatprep.subr.bf16.mxu0 0
        %457 = vmatpush1.bf16.msra.mxu0 0
        %458 = vmatprep.subr.bf16.mxu0 0
        %459 = vmatpush1.bf16.msra.mxu0 0
        %460 = vmatprep.subr.bf16.mxu0 %v448
        %461 = vmatpush1.bf16.msra.mxu0 %v445
        %462 = vmatprep.subr.bf16.mxu0 %v432
        %463 = vmatpush1.bf16.msra.mxu0 %v431
        %464 = vmatprep.subr.bf16.mxu0 %v430
        %465 = vmatpush1.bf16.msra.mxu0 %v429
        %466 = vmatprep.subr.bf16.mxu0 0
        %467 = vmatpush2.bf16.msra.mxu0 0
        %468 = vmatprep.subr.bf16.mxu0 0
        %469 = vmatpush2.bf16.msra.mxu0 0
        %470 = vmatprep.subr.bf16.mxu0 0
        %471 = vmatpush2.bf16.msra.mxu0 0
        %472 = vmatprep.subr.bf16.mxu0 0
        %473 = vmatpush2.bf16.msra.mxu0 0
        %474 = vmatprep.subr.bf16.mxu0 0
        %475 = vmatpush2.bf16.msra.mxu0 0
        %476 = vmatprep.subr.bf16.mxu0 0
        %477 = vmatpush2.bf16.msra.mxu0 0
        %478 = vmatprep.subr.bf16.mxu0 0
        %479 = vmatpush2.bf16.msra.mxu0 0
        %480 = vmatprep.subr.bf16.mxu0 0
        %481 = vmatpush2.bf16.msra.mxu0 0
        %482 = vmatprep.mubr.bf16.mxu0 0
        %483 = vmatmul.mubr.bf16.gmra.mxu0 %v441
        %v484 = vpop.f32.mrf.mxu0
        %v485 = vadd.f32 %v412, %v484
        %v486 = vpop.f32.mrf.mxu0
        %v487 = vadd.f32 %v412, %v486
        %v488 = vpop.f32.mrf.mxu0
        %v489 = vpop.f32.mrf.mxu0
        %490 = vdwg.mxu0
        %v491 = vtanh.pop %v485
        %v492 = vtanh.pop %v487
        %v495 = vcombine.low %v491, %v492
        %497 = vst [vmem:[%s186] sm:$0xff] %v495
        %s498 = sand.u32 %s96, 1
        %s499 = scalar_lea.sflag [#allocation5], %s498
        %s500 = sand.u32 %s96, 1
        %s501 = smul.addr %s500, 8
        %s502 = scalar_lea.vmem [#allocation6], %s501
        // Predicated region
        $region37: #{tpu_custom_call.1} parent=31 // pred_check
          %p503 = pneg %p106
        $region38: #{tpu_custom_call.1} parent=31 // pred_check_branch
          %505 = sbr.rel (%p503) target = $region40
        $region39: #{tpu_custom_call.1} parent=31 // pred_region
          %s507 = ssub.s32 128, 128
          %508 = vsyncadd %s499, %s507
          %s509 = smul.addr %s20, 2
          %s510 = smul.addr %s509, 64
          %s511 = scalar_lea.hbm %s3, %s510
          %s513 = sshll.u32 %s502, 4
          %s514 = int_to_ptr.vmem [resolvable:$true] %s513
          %516 = dma.vmem_to_hbm [thread:$0]  %s514, 128, %s511, %s499
        $region40: #{tpu_custom_call.1} parent=31 // pred_fallthru
          _
      $region32: #{tpu_custom_call.1} parent=5 // pred_fallthru
        _
      %p517 = scmp.le.s32.totalorder 2, %s15
      // Predicated region
      $region41: #{tpu_custom_call.1} parent=5 // pred_check
        %p518 = pneg %p517
      $region42: #{tpu_custom_call.1} parent=5 // pred_check_branch
        %520 = sbr.rel (%p518) target = $region44
      $region43: #{tpu_custom_call.1} parent=5 // pred_region
        %s521 = ssub.s32 %s15, 2
        // Predicated region
        $region45: #{tpu_custom_call.1} parent=43 // pred_check
          %p522 = pneg %p112
        $region46: #{tpu_custom_call.1} parent=43 // pred_check_branch
          %524 = sbr.rel (%p522) target = $region48
        $region47: #{tpu_custom_call.1} parent=43 // pred_region
          %s525 = sand.u32 %s97, 1
          %s526 = scalar_lea.sflag [#allocation5], %s525
          %s527 = sand.u32 %s97, 1
          %s528 = smul.addr %s527, 8
          %s529 = scalar_lea.vmem [#allocation6], %s528
          %530 = dma.done %s526, 128
        $region48: #{tpu_custom_call.1} parent=43 // pred_fallthru
          _
      $region44: #{tpu_custom_call.1} parent=5 // pred_fallthru
        _
    $region6: #{tpu_custom_call.1} parent=1 // loop_footer
      %s19 = sadd.s32 1, %s15
    $region7: #{tpu_custom_call.1} parent=1 // loop_footer_branch
      %14 = sbr.rel target = $region3
    $region8: #{tpu_custom_call.1} parent=1 // loop_exit
      _
    %531 = vsyncpa [#allocation4], 1
    %s532 = scalar_lea.sflag [#allocation4], 1
    %533 = vsyncpa %s532, 1
    %534 = vsyncpa [#allocation5], 1
    %s535 = scalar_lea.sflag [#allocation5], 1
    %536 = vsyncpa %s535, 1

</llo_original>
